<compile_context>
chip_gen: v7x
topology: tpu7x:2x2x1
jax: 0.10.0
libtpu: 0.0.40
codegen_flags: <defaults>
</compile_context>

<pallas_src>
import jax
import jax.numpy as jnp
from jax.experimental import pallas as pl
from jax.experimental.pallas import tpu as pltpu


def _mlp_kernel(x_ref, w1_ref, b1_ref, w2_ref, b2_ref, w3_ref, b3_ref, o_ref):
    # fc1: 512 -> 256, LeakyReLU(0.2).  MXU matmul, f32 accumulation.
    h1 = jnp.dot(x_ref[...], w1_ref[...], preferred_element_type=jnp.float32)
    h1 = h1 + b1_ref[...]
    h1 = jnp.maximum(h1, 0.2 * h1)            # LeakyReLU(0.2) exactly

    # fc2: 256 -> 128, LeakyReLU(0.2).
    h2 = jnp.dot(h1.astype(w2_ref.dtype), w2_ref[...],
                 preferred_element_type=jnp.float32)
    h2 = h2 + b2_ref[...]
    h2 = jnp.maximum(h2, 0.2 * h2)

    # fc3: 128 -> 1, Sigmoid.  w3 stored as a lane-dense (1, 128) row; contracting
    # both operands over their last dim yields a lane-dense (1, block_b) result.
    h3 = jax.lax.dot_general(
        w3_ref[...], h2.astype(w3_ref.dtype),
        dimension_numbers=(((1,), (1,)), ((), ())),
        preferred_element_type=jnp.float32)   # (1, block_b)
    h3 = h3 + b3_ref[...]                     # (1, 1) broadcast
    o_ref[...] = jax.nn.sigmoid(h3).astype(o_ref.dtype)  # lane-dense store


def _auto_tiling(B):
    """Return (block_b, padded_B): largest MXU-aligned tile, grid>=2 when possible."""
    for cand in (512, 256, 128):
        if B % cand == 0 and B // cand >= 2:
            return cand, B
    for cand in (512, 256, 128):
        if B % cand == 0:
            return cand, B
    if B <= 1024:
        pad_b = max(8, -(-B // 8) * 8)        # single whole-batch block, 8-aligned
        return pad_b, pad_b
    pad_b = -(-B // 256) * 256                # big ragged batch: pad to 256 tiles
    return 256, pad_b


def correlation_regressor(x, params, *, block_b=None, use_bf16=True):
    """x: (B, 512) float32. params: dict of weights/biases. Returns (B, 1) float32."""
    B, D = x.shape
    assert D == 512

    if block_b is None:
        block_b, padded_B = _auto_tiling(B)
    else:
        padded_B = -(-B // block_b) * block_b
    num_blocks = padded_B // block_b

    if padded_B != B:
        x = jnp.pad(x, ((0, padded_B - B), (0, 0)))

    w1, b1 = params["w1"], params["b1"]        # (512,256), (1,256)
    w2, b2 = params["w2"], params["b2"]        # (256,128), (1,128)
    w3, b3 = params["w3"], params["b3"]        # (128,1),   (1,1)
    w3_row = w3.reshape(1, -1)                 # lane-dense (1, 128)

    mat_dtype = jnp.bfloat16 if use_bf16 else x.dtype
    x_m = x.astype(mat_dtype)
    w1_m = w1.astype(mat_dtype)
    w2_m = w2.astype(mat_dtype)
    w3_m = w3_row.astype(mat_dtype)
    b1_f = b1.astype(jnp.float32)
    b2_f = b2.astype(jnp.float32)
    b3_f = b3.astype(jnp.float32)

    flops = 2 * padded_B * (512 * 256 + 256 * 128 + 128)
    bytes_accessed = int(
        x_m.size * x_m.dtype.itemsize
        + sum(a.size * a.dtype.itemsize for a in (w1_m, b1_f, w2_m, b2_f, w3_m, b3_f))
        + padded_B * 4)
    cost = pl.CostEstimate(flops=flops, transcendentals=padded_B,
                           bytes_accessed=bytes_accessed)

    # Weights/biases: full blocks with constant index maps -> fetched once, stay
    # resident in VMEM across all grid steps.
    full = lambda a: pl.BlockSpec(a.shape, lambda i: (0, 0))

    out = pl.pallas_call(
        _mlp_kernel,
        out_shape=jax.ShapeDtypeStruct((1, padded_B), jnp.float32),
        grid_spec=pltpu.PrefetchScalarGridSpec(
            num_scalar_prefetch=0,
            grid=(num_blocks,),
            in_specs=[
                pl.BlockSpec((block_b, 512), lambda i: (i, 0)),   # x batch tile
                full(w1_m), full(b1_f),
                full(w2_m), full(b2_f),
                full(w3_m), full(b3_f),
            ],
            out_specs=pl.BlockSpec((1, block_b), lambda i: (0, i)),  # lane-dense out
        ),
        compiler_params=pltpu.CompilerParams(
            dimension_semantics=("parallel",)),
        cost_estimate=cost,
    )(x_m, w1_m, b1_f, w2_m, b2_f, w3_m, b3_f)

    return out[0, :B].reshape(B, 1)


def init_params(key):
    """Deterministic init mimicking PyTorch nn.Linear default (uniform +-1/sqrt(fan_in))."""
    ks = jax.random.split(key, 6)

    def linear(kw, kb, fan_in, fan_out):
        bound = 1.0 / jnp.sqrt(fan_in)
        w = jax.random.uniform(kw, (fan_in, fan_out), jnp.float32, -bound, bound)
        b = jax.random.uniform(kb, (1, fan_out), jnp.float32, -bound, bound)
        return w, b

    w1, b1 = linear(ks[0], ks[1], 512, 256)
    w2, b2 = linear(ks[2], ks[3], 256, 128)
    w3, b3 = linear(ks[4], ks[5], 128, 1)
    return {"w1": w1, "b1": b1, "w2": w2, "b2": b2, "w3": w3, "b3": b3}


def reference(x, p):
    h = x @ p["w1"] + p["b1"]
    h = jnp.where(h > 0, h, 0.2 * h)
    h = h @ p["w2"] + p["b2"]
    h = jnp.where(h > 0, h, 0.2 * h)
    h = h @ p["w3"] + p["b3"]
    return jax.nn.sigmoid(h)


if __name__ == "__main__":
    key = jax.random.PRNGKey(0)
    kx, kp = jax.random.split(key)

    params = init_params(kp)

    # Main check: B=256 -> block_b=128, grid=2 (both v7x TCs active, MXU-aligned).
    B = 256
    x = jax.random.normal(kx, (B, 512), jnp.float32)
    ref = reference(x, params)

    # f32 matmul path (exact check against the reference)
    out_f32 = jax.block_until_ready(correlation_regressor(x, params, use_bf16=False))
    assert out_f32.shape == (B, 1)
    assert jnp.allclose(out_f32, ref, atol=1e-5, rtol=1e-5), "f32 mismatch vs reference"

    # bf16 matmul path (f32 accumulation) -- default, looser tolerance
    out_bf16 = jax.block_until_ready(correlation_regressor(x, params, use_bf16=True))
    assert out_bf16.shape == (B, 1)
    assert jnp.allclose(out_bf16, ref, atol=1e-2, rtol=1e-2), "bf16 mismatch vs reference"

    # Ragged batch path (exercises the padding branch, single whole-batch block).
    B2 = 100
    x2 = jax.random.normal(jax.random.fold_in(kx, 1), (B2, 512), jnp.float32)
    ref2 = reference(x2, params)
    out2 = jax.block_until_ready(correlation_regressor(x2, params, use_bf16=False))
    assert out2.shape == (B2, 1)
    assert jnp.allclose(out2, ref2, atol=1e-5, rtol=1e-5), "ragged-batch mismatch"

    print("KERNEL_OK")
</pallas_src>

<mosaic_0001>
module attributes {stable_mosaic.version = 11 : i64} {
  func.func @_mlp_kernel(%arg0: i32, %arg1: memref<128x512xf32, #tpu.memory_space<vmem>>, %arg2: memref<512x256xf32, #tpu.memory_space<vmem>>, %arg3: memref<1x256xf32, #tpu.memory_space<vmem>>, %arg4: memref<256x128xf32, #tpu.memory_space<vmem>>, %arg5: memref<1x128xf32, #tpu.memory_space<vmem>>, %arg6: memref<1x128xf32, #tpu.memory_space<vmem>>, %arg7: memref<1x1xf32, #tpu.memory_space<vmem>>, %arg8: memref<1x128xf32, #tpu.memory_space<vmem>>) attributes {dimension_semantics = [#tpu.dimension_semantics<parallel>], iteration_bounds = array<i64: 2>, scalar_prefetch = 0 : i64, scratch_operands = 0 : i64, tpu.core_type = #tpu.core_type<tc>, window_params = [{transform_indices = @transform_0, window_bounds = array<i64: 128, 512>}, {pipeline_mode = #tpu.pipeline_mode<synchronous>, transform_indices = @transform_1, window_bounds = array<i64: 512, 256>}, {pipeline_mode = #tpu.pipeline_mode<synchronous>, transform_indices = @transform_2, window_bounds = array<i64: 1, 256>}, {pipeline_mode = #tpu.pipeline_mode<synchronous>, transform_indices = @transform_3, window_bounds = array<i64: 256, 128>}, {pipeline_mode = #tpu.pipeline_mode<synchronous>, transform_indices = @transform_4, window_bounds = array<i64: 1, 128>}, {pipeline_mode = #tpu.pipeline_mode<synchronous>, transform_indices = @transform_5, window_bounds = array<i64: 1, 128>}, {pipeline_mode = #tpu.pipeline_mode<synchronous>, transform_indices = @transform_6, window_bounds = array<i64: 1, 1>}, {transform_indices = @transform_7, window_bounds = array<i64: 1, 128>}]} {
    %c0 = arith.constant 0 : index
    %c0_0 = arith.constant 0 : index
    %0 = vector.load %arg1[%c0, %c0_0] : memref<128x512xf32, #tpu.memory_space<vmem>>, vector<128x512xf32>
    %c0_1 = arith.constant 0 : index
    %c0_2 = arith.constant 0 : index
    %1 = vector.load %arg2[%c0_1, %c0_2] : memref<512x256xf32, #tpu.memory_space<vmem>>, vector<512x256xf32>
    %cst = arith.constant dense<0.000000e+00> : vector<128x256xf32>
    %2 = tpu.matmul %0, %1, %cst {dimension_numbers = #tpu.dot_dimension_numbers<[1], [0], [0], [1], [0, 0, 1, 1], [], []>} : vector<128x512xf32>, vector<512x256xf32>, vector<128x256xf32> -> vector<128x256xf32>
    %c0_3 = arith.constant 0 : index
    %c0_4 = arith.constant 0 : index
    %3 = vector.load %arg3[%c0_3, %c0_4] : memref<1x256xf32, #tpu.memory_space<vmem>>, vector<1x256xf32>
    %4 = vector.broadcast %3 : vector<1x256xf32> to vector<128x256xf32>
    %5 = arith.addf %2, %4 : vector<128x256xf32>
    %cst_5 = arith.constant 2.000000e-01 : f32
    %6 = vector.broadcast %cst_5 : f32 to vector<128x256xf32>
    %7 = arith.mulf %6, %5 : vector<128x256xf32>
    %8 = arith.maximumf %5, %7 : vector<128x256xf32>
    %c0_6 = arith.constant 0 : index
    %c0_7 = arith.constant 0 : index
    %9 = vector.load %arg4[%c0_6, %c0_7] : memref<256x128xf32, #tpu.memory_space<vmem>>, vector<256x128xf32>
    %cst_8 = arith.constant dense<0.000000e+00> : vector<128x128xf32>
    %10 = tpu.matmul %8, %9, %cst_8 {dimension_numbers = #tpu.dot_dimension_numbers<[1], [0], [0], [1], [0, 0, 1, 1], [], []>} : vector<128x256xf32>, vector<256x128xf32>, vector<128x128xf32> -> vector<128x128xf32>
    %c0_9 = arith.constant 0 : index
    %c0_10 = arith.constant 0 : index
    %11 = vector.load %arg5[%c0_9, %c0_10] : memref<1x128xf32, #tpu.memory_space<vmem>>, vector<1x128xf32>
    %12 = vector.broadcast %11 : vector<1x128xf32> to vector<128x128xf32>
    %13 = arith.addf %10, %12 : vector<128x128xf32>
    %cst_11 = arith.constant 2.000000e-01 : f32
    %14 = vector.broadcast %cst_11 : f32 to vector<128x128xf32>
    %15 = arith.mulf %14, %13 : vector<128x128xf32>
    %16 = arith.maximumf %13, %15 : vector<128x128xf32>
    %c0_12 = arith.constant 0 : index
    %c0_13 = arith.constant 0 : index
    %17 = vector.load %arg6[%c0_12, %c0_13] : memref<1x128xf32, #tpu.memory_space<vmem>>, vector<1x128xf32>
    %cst_14 = arith.constant dense<0.000000e+00> : vector<1x128xf32>
    %18 = tpu.matmul %17, %16, %cst_14 {dimension_numbers = #tpu.dot_dimension_numbers<[1], [1], [0], [0], [0, 0, 1, 0], [], []>} : vector<1x128xf32>, vector<128x128xf32>, vector<1x128xf32> -> vector<1x128xf32>
    %c0_15 = arith.constant 0 : index
    %c0_16 = arith.constant 0 : index
    %19 = vector.load %arg7[%c0_15, %c0_16] : memref<1x1xf32, #tpu.memory_space<vmem>>, vector<1x1xf32>
    %20 = vector.broadcast %19 : vector<1x1xf32> to vector<1x128xf32>
    %21 = arith.addf %18, %20 : vector<1x128xf32>
    %22 = arith.negf %21 : vector<1x128xf32>
    %23 = math.exp %22 : vector<1x128xf32>
    %cst_17 = arith.constant 1.000000e+00 : f32
    %24 = vector.broadcast %cst_17 : f32 to vector<1x128xf32>
    %25 = arith.addf %24, %23 : vector<1x128xf32>
    %26 = arith.divf %24, %25 : vector<1x128xf32>
    %c0_18 = arith.constant 0 : index
    %c0_19 = arith.constant 0 : index
    %27 = vector.load %arg8[%c0_18, %c0_19] : memref<1x128xf32, #tpu.memory_space<vmem>>, vector<1x128xf32>
    tpu.vector_store %arg8[%c0_18, %c0_19], %26 {strides = array<i32>} : memref<1x128xf32, #tpu.memory_space<vmem>>, vector<1x128xf32>,
    return
  }
  func.func @transform_0(%arg0: i32) -> (i32, i32) {
    %c0_i32 = arith.constant 0 : i32
    %c0_i32_0 = arith.constant 0 : i32
    return %arg0, %c0_i32 : i32, i32
  }
  func.func @transform_1(%arg0: i32) -> (i32, i32) {
    %c0_i32 = arith.constant 0 : i32
    %c0_i32_0 = arith.constant 0 : i32
    %c0_i32_1 = arith.constant 0 : i32
    return %c0_i32, %c0_i32_0 : i32, i32
  }
  func.func @transform_2(%arg0: i32) -> (i32, i32) {
    %c0_i32 = arith.constant 0 : i32
    %c0_i32_0 = arith.constant 0 : i32
    %c0_i32_1 = arith.constant 0 : i32
    return %c0_i32, %c0_i32_0 : i32, i32
  }
  func.func @transform_3(%arg0: i32) -> (i32, i32) {
    %c0_i32 = arith.constant 0 : i32
    %c0_i32_0 = arith.constant 0 : i32
    %c0_i32_1 = arith.constant 0 : i32
    return %c0_i32, %c0_i32_0 : i32, i32
  }
  func.func @transform_4(%arg0: i32) -> (i32, i32) {
    %c0_i32 = arith.constant 0 : i32
    %c0_i32_0 = arith.constant 0 : i32
    %c0_i32_1 = arith.constant 0 : i32
    return %c0_i32, %c0_i32_0 : i32, i32
  }
  func.func @transform_5(%arg0: i32) -> (i32, i32) {
    %c0_i32 = arith.constant 0 : i32
    %c0_i32_0 = arith.constant 0 : i32
    %c0_i32_1 = arith.constant 0 : i32
    return %c0_i32, %c0_i32_0 : i32, i32
  }
  func.func @transform_6(%arg0: i32) -> (i32, i32) {
    %c0_i32 = arith.constant 0 : i32
    %c0_i32_0 = arith.constant 0 : i32
    %c0_i32_1 = arith.constant 0 : i32
    return %c0_i32, %c0_i32_0 : i32, i32
  }
  func.func @transform_7(%arg0: i32) -> (i32, i32) {
    %c0_i32 = arith.constant 0 : i32
    %c0_i32_0 = arith.constant 0 : i32
    return %c0_i32, %arg0 : i32, i32
  }
}

</mosaic_0001>

<llo_original>
// kernel: tpu_custom_call.1
$region0: #{tpu_custom_call.1}
  #allocation0 [shape = 'u32[]', space=smem, size = 0x4, offset = 0x4, fixed_abs, tag = 'smem constant byte address 0x4 - core index']
  #allocation1 [shape = 'u32[144,128]{1,0:T(1,128)}', space=vmem, size = 0x12000, scoped, tag = 'internal scratch']
  #allocation2 [shape = 'f32[1,1]{1,0:T(1,128)S(1)}', space=vmem, size = 0x200, scoped, tag = 'scoped memory for tpu_custom_call.1']
  %s0 = inlined_call_operand.hbm [shape: f32[256,512], index: 0, kind: input, shape index: {}]
  %s1 = inlined_call_operand.hbm [shape: f32[512,256], index: 1, kind: input, shape index: {}]
  %s2 = inlined_call_operand.vmem [shape: f32[1,256], index: 2, kind: input, shape index: {}]
  %s3 = inlined_call_operand.hbm [shape: f32[256,128], index: 3, kind: input, shape index: {}]
  %s4 = inlined_call_operand.vmem [shape: f32[1,128], index: 4, kind: input, shape index: {}]
  %s5 = inlined_call_operand.vmem [shape: f32[1,128], index: 5, kind: input, shape index: {}]
  %s6 = inlined_call_operand.<no memory space> [shape: f32[1,1], index: 6, kind: input, shape index: {}]
  %s7 = inlined_call_operand.hbm [shape: f32[1,256], index: 7, kind: output, shape index: {}]
  %s8 = sld [smem:[#allocation0]]
  $region73: #{tpu_custom_call.1} parent=0
    _
  %s10 = ssub.s32 1, %s8
  %s11 = scalar_select 0, %s10, %s8
  %v12 = vstv %s6
  %13 = vst [vmem:[#allocation2] sm:$0x1] %v12
  $region1: #{tpu_custom_call.1} parent=0
    #allocation3 [shape = 'u8[524288]{0}', space=vmem, size = 0x80000, scoped, tag = 'input window, operand 0']
    #allocation4 [shape = 's32[2]{0}', space=sflag, size = 0x8, scoped, tag = 'scoped memory for tpu_custom_call.1']
    #allocation5 [shape = 's32[2]{0}', space=sflag, size = 0x8, scoped, tag = 'scoped memory for tpu_custom_call.1']
    #allocation6 [shape = 'u8[524288]{0}', space=vmem, size = 0x80000, scoped, tag = 'input window, operand 1, single buffered']
    #allocation7 [shape = 's32[1]{0}', space=sflag, size = 0x4, scoped, tag = 'scoped memory for tpu_custom_call.1']
    #allocation8 [shape = 'u8[131072]{0}', space=vmem, size = 0x20000, scoped, tag = 'input window, operand 3, single buffered']
    #allocation9 [shape = 'u8[1024]{0}', space=vmem, size = 0x400, scoped, tag = 'output window, operand 0']
    %14 = vsyncpa [#allocation4], 0
    %s15 = scalar_lea.sflag [#allocation4], 1
    %16 = vsyncpa %s15, 0
    %17 = vsyncpa [#allocation7], 0
    %18 = vsyncpa [#allocation5], 0
    %s19 = scalar_lea.sflag [#allocation5], 1
    %20 = vsyncpa %s19, 0
    loop: start=0, step=1, limit=4
    $region2: #{tpu_custom_call.1} parent=1 // loop_pre_header
      _
    $region3: #{tpu_custom_call.1} parent=1 // loop_header
      %s22 = sphi 0, %s26
      %p23 = scmp.ge.s32.totalorder %s22, 4
      %s32 = sphi 0, %s34
      %s35 = sphi 0, %s32
      %s36 = sphi 0, %s35
      %s52 = sphi 0, %s36
      %s56 = sphi 0, %s56
      %s58 = sphi 0, %s56
      %s59 = sphi 0, %s58
      %s73 = sphi 0, %s59
      %s77 = sphi 0, %s77
      %s79 = sphi 0, %s77
      %s80 = sphi 0, %s79
      %s94 = sphi 0, %s80
      %s98 = sphi 0, %s98
      %s100 = sphi 0, %s98
      %s101 = sphi 0, %s100
      %s115 = sphi 0, %s101
      %s119 = sphi 0, %s119
      %s121 = sphi 0, %s119
      %s122 = sphi 0, %s121
      %s136 = sphi 0, %s122
      %s140 = sphi 0, %s140
      %s142 = sphi 0, %s140
      %s143 = sphi 0, %s142
      %s157 = sphi 0, %s143
      %s161 = sphi 0, %s161
      %s163 = sphi 0, %s161
      %s164 = sphi 0, %s163
      %s178 = sphi 0, %s164
      %s184 = sphi 0, %s186
      %s187 = sphi 0, %s184
      %s188 = sphi 0, %s187
      %s204 = sphi 0, %s188
    $region4: #{tpu_custom_call.1} parent=1 // loop_header_branch
      %25 = sbr.rel (%p23) target = $region8
    $region5: #{tpu_custom_call.1} parent=1 // loop_body
      %s27 = ssub.s32 %s22, 1
      %s28 = ssub.s32 %s22, 2
      %s29 = sadd.s32 %s22, 1
      %s30 = ssub.s32 %s22, %s29
      %p31 = scmp.eq.s32.totalorder %s30, 0
      %s33 = sadd.s32 %s32, 1
      %s34 = scalar_select %p31, %s32, %s33
      %p37 = pneg %p31
      %p38 = scmp.eq.s32.totalorder %s22, 1
      %p39 = por %p37, %p38
      %p40 = scmp.ne.s32.totalorder %s32, %s35
      %p41 = scmp.eq.s32.totalorder %s22, 0
      %p42 = por %p40, %p41
      %p43 = scmp.ne.s32.totalorder %s32, %s35
      %p44 = scmp.eq.s32.totalorder %s27, 1
      %p45 = por %p43, %p44
      %p46 = scmp.ne.s32.totalorder %s35, %s36
      %p47 = scmp.eq.s32.totalorder %s27, 0
      %p48 = por %p46, %p47
      %p49 = scmp.ne.s32.totalorder %s35, %s36
      %p50 = scmp.eq.s32.totalorder %s28, 1
      %p51 = por %p49, %p50
      %p53 = scmp.ne.s32.totalorder %s36, %s52
      %p54 = scmp.eq.s32.totalorder %s28, 0
      %p55 = por %p53, %p54
      %s57 = sadd.s32 %s56, 1
      %p60 = scmp.eq.s32.totalorder %s22, 1
      %p61 = scmp.ne.s32.totalorder %s56, %s58
      %p62 = scmp.eq.s32.totalorder %s22, 0
      %p63 = por %p61, %p62
      %p64 = scmp.ne.s32.totalorder %s56, %s58
      %p65 = scmp.eq.s32.totalorder %s27, 1
      %p66 = por %p64, %p65
      %p67 = scmp.ne.s32.totalorder %s58, %s59
      %p68 = scmp.eq.s32.totalorder %s27, 0
      %p69 = por %p67, %p68
      %p70 = scmp.ne.s32.totalorder %s58, %s59
      %p71 = scmp.eq.s32.totalorder %s28, 1
      %p72 = por %p70, %p71
      %p74 = scmp.ne.s32.totalorder %s59, %s73
      %p75 = scmp.eq.s32.totalorder %s28, 0
      %p76 = por %p74, %p75
      %s78 = sadd.s32 %s77, 1
      %p81 = scmp.eq.s32.totalorder %s22, 1
      %p82 = scmp.ne.s32.totalorder %s77, %s79
      %p83 = scmp.eq.s32.totalorder %s22, 0
      %p84 = por %p82, %p83
      %p85 = scmp.ne.s32.totalorder %s77, %s79
      %p86 = scmp.eq.s32.totalorder %s27, 1
      %p87 = por %p85, %p86
      %p88 = scmp.ne.s32.totalorder %s79, %s80
      %p89 = scmp.eq.s32.totalorder %s27, 0
      %p90 = por %p88, %p89
      %p91 = scmp.ne.s32.totalorder %s79, %s80
      %p92 = scmp.eq.s32.totalorder %s28, 1
      %p93 = por %p91, %p92
      %p95 = scmp.ne.s32.totalorder %s80, %s94
      %p96 = scmp.eq.s32.totalorder %s28, 0
      %p97 = por %p95, %p96
      %s99 = sadd.s32 %s98, 1
      %p102 = scmp.eq.s32.totalorder %s22, 1
      %p103 = scmp.ne.s32.totalorder %s98, %s100
      %p104 = scmp.eq.s32.totalorder %s22, 0
      %p105 = por %p103, %p104
      %p106 = scmp.ne.s32.totalorder %s98, %s100
      %p107 = scmp.eq.s32.totalorder %s27, 1
      %p108 = por %p106, %p107
      %p109 = scmp.ne.s32.totalorder %s100, %s101
      %p110 = scmp.eq.s32.totalorder %s27, 0
      %p111 = por %p109, %p110
      %p112 = scmp.ne.s32.totalorder %s100, %s101
      %p113 = scmp.eq.s32.totalorder %s28, 1
      %p114 = por %p112, %p113
      %p116 = scmp.ne.s32.totalorder %s101, %s115
      %p117 = scmp.eq.s32.totalorder %s28, 0
      %p118 = por %p116, %p117
      %s120 = sadd.s32 %s119, 1
      %p123 = scmp.eq.s32.totalorder %s22, 1
      %p124 = scmp.ne.s32.totalorder %s119, %s121
      %p125 = scmp.eq.s32.totalorder %s22, 0
      %p126 = por %p124, %p125
      %p127 = scmp.ne.s32.totalorder %s119, %s121
      %p128 = scmp.eq.s32.totalorder %s27, 1
      %p129 = por %p127, %p128
      %p130 = scmp.ne.s32.totalorder %s121, %s122
      %p131 = scmp.eq.s32.totalorder %s27, 0
      %p132 = por %p130, %p131
      %p133 = scmp.ne.s32.totalorder %s121, %s122
      %p134 = scmp.eq.s32.totalorder %s28, 1
      %p135 = por %p133, %p134
      %p137 = scmp.ne.s32.totalorder %s122, %s136
      %p138 = scmp.eq.s32.totalorder %s28, 0
      %p139 = por %p137, %p138
      %s141 = sadd.s32 %s140, 1
      %p144 = scmp.eq.s32.totalorder %s22, 1
      %p145 = scmp.ne.s32.totalorder %s140, %s142
      %p146 = scmp.eq.s32.totalorder %s22, 0
      %p147 = por %p145, %p146
      %p148 = scmp.ne.s32.totalorder %s140, %s142
      %p149 = scmp.eq.s32.totalorder %s27, 1
      %p150 = por %p148, %p149
      %p151 = scmp.ne.s32.totalorder %s142, %s143
      %p152 = scmp.eq.s32.totalorder %s27, 0
      %p153 = por %p151, %p152
      %p154 = scmp.ne.s32.totalorder %s142, %s143
      %p155 = scmp.eq.s32.totalorder %s28, 1
      %p156 = por %p154, %p155
      %p158 = scmp.ne.s32.totalorder %s143, %s157
      %p159 = scmp.eq.s32.totalorder %s28, 0
      %p160 = por %p158, %p159
      %s162 = sadd.s32 %s161, 1
      %p165 = scmp.eq.s32.totalorder %s22, 1
      %p166 = scmp.ne.s32.totalorder %s161, %s163
      %p167 = scmp.eq.s32.totalorder %s22, 0
      %p168 = por %p166, %p167
      %p169 = scmp.ne.s32.totalorder %s161, %s163
      %p170 = scmp.eq.s32.totalorder %s27, 1
      %p171 = por %p169, %p170
      %p172 = scmp.ne.s32.totalorder %s163, %s164
      %p173 = scmp.eq.s32.totalorder %s27, 0
      %p174 = por %p172, %p173
      %p175 = scmp.ne.s32.totalorder %s163, %s164
      %p176 = scmp.eq.s32.totalorder %s28, 1
      %p177 = por %p175, %p176
      %p179 = scmp.ne.s32.totalorder %s164, %s178
      %p180 = scmp.eq.s32.totalorder %s28, 0
      %p181 = por %p179, %p180
      %s182 = ssub.s32 %s22, %s29
      %p183 = scmp.eq.s32.totalorder %s182, 0
      %s185 = sadd.s32 %s184, 1
      %s186 = scalar_select %p183, %s184, %s185
      %p189 = pneg %p183
      %p190 = scmp.eq.s32.totalorder %s22, 1
      %p191 = por %p189, %p190
      %p192 = scmp.ne.s32.totalorder %s184, %s187
      %p193 = scmp.eq.s32.totalorder %s22, 0
      %p194 = por %p192, %p193
      %p195 = scmp.ne.s32.totalorder %s184, %s187
      %p196 = scmp.eq.s32.totalorder %s27, 1
      %p197 = por %p195, %p196
      %p198 = scmp.ne.s32.totalorder %s187, %s188
      %p199 = scmp.eq.s32.totalorder %s27, 0
      %p200 = por %p198, %p199
      %p201 = scmp.ne.s32.totalorder %s187, %s188
      %p202 = scmp.eq.s32.totalorder %s28, 1
      %p203 = por %p201, %p202
      %p205 = scmp.ne.s32.totalorder %s188, %s204
      %p206 = scmp.eq.s32.totalorder %s28, 0
      %p207 = por %p205, %p206
      %p208 = scmp.le.s32.totalorder 1, %s22
      %p209 = scmp.lt.s32.totalorder %s22, 3
      %p210 = pnand %p208, %p209
      %p211 = pneg %p210
      // Predicated region
      $region9: #{tpu_custom_call.1} parent=5 // pred_check
        _
      $region10: #{tpu_custom_call.1} parent=5 // pred_check_branch
        %213 = sbr.rel (%p210) target = $region12
      $region11: #{tpu_custom_call.1} parent=5 // pred_region
        %s214 = ssub.s32 %s22, 1
        // Predicated region
        $region13: #{tpu_custom_call.1} parent=11 // pred_check
          %p215 = pneg %p69
        $region14: #{tpu_custom_call.1} parent=11 // pred_check_branch
          %217 = sbr.rel (%p215) target = $region16
        $region15: #{tpu_custom_call.1} parent=11 // pred_region
          %s219 = ssub.s32 16384, 16384
          %220 = vsyncadd [#allocation7], %s219
          %s221 = sshll.u32 [#allocation6], 4
          %s222 = int_to_ptr.vmem [resolvable:$true] %s221
          %227 = dma.hbm_to_vmem [thread:$0]  %s1, 16384, %s222, [#allocation7], 256, 256, 16
        $region16: #{tpu_custom_call.1} parent=11 // pred_fallthru
          _
        // Predicated region
        $region17: #{tpu_custom_call.1} parent=11 // pred_check
          %p228 = pneg %p90
        $region18: #{tpu_custom_call.1} parent=11 // pred_check_branch
          %230 = sbr.rel (%p228) target = $region20
        $region19: #{tpu_custom_call.1} parent=11 // pred_region
          _
        $region20: #{tpu_custom_call.1} parent=11 // pred_fallthru
          _
        // Predicated region
        $region21: #{tpu_custom_call.1} parent=11 // pred_check
          %p231 = pneg %p111
        $region22: #{tpu_custom_call.1} parent=11 // pred_check_branch
          %233 = sbr.rel (%p231) target = $region24
        $region23: #{tpu_custom_call.1} parent=11 // pred_region
          %s235 = ssub.s32 4096, 4096
          %236 = vsyncadd [#allocation7], %s235
          %s237 = sshll.u32 [#allocation8], 4
          %s238 = int_to_ptr.vmem [resolvable:$true] %s237
          %243 = dma.hbm_to_vmem [thread:$0]  %s3, 4096, %s238, [#allocation7], 128, 128, 8
        $region24: #{tpu_custom_call.1} parent=11 // pred_fallthru
          _
        // Predicated region
        $region25: #{tpu_custom_call.1} parent=11 // pred_check
          %p244 = pneg %p132
        $region26: #{tpu_custom_call.1} parent=11 // pred_check_branch
          %246 = sbr.rel (%p244) target = $region28
        $region27: #{tpu_custom_call.1} parent=11 // pred_region
          _
        $region28: #{tpu_custom_call.1} parent=11 // pred_fallthru
          _
        // Predicated region
        $region29: #{tpu_custom_call.1} parent=11 // pred_check
          %p247 = pneg %p153
        $region30: #{tpu_custom_call.1} parent=11 // pred_check_branch
          %249 = sbr.rel (%p247) target = $region32
        $region31: #{tpu_custom_call.1} parent=11 // pred_region
          _
        $region32: #{tpu_custom_call.1} parent=11 // pred_fallthru
          _
        // Predicated region
        $region33: #{tpu_custom_call.1} parent=11 // pred_check
          %p250 = pneg %p174
        $region34: #{tpu_custom_call.1} parent=11 // pred_check_branch
          %252 = sbr.rel (%p250) target = $region36
        $region35: #{tpu_custom_call.1} parent=11 // pred_region
          _
        $region36: #{tpu_custom_call.1} parent=11 // pred_fallthru
          _
      $region12: #{tpu_custom_call.1} parent=5 // pred_fallthru
        _
      %p253 = scmp.lt.s32.totalorder %s22, 2
      // Predicated region
      $region37: #{tpu_custom_call.1} parent=5 // pred_check
        %p254 = pneg %p253
      $region38: #{tpu_custom_call.1} parent=5 // pred_check_branch
        %256 = sbr.rel (%p254) target = $region40
      $region39: #{tpu_custom_call.1} parent=5 // pred_region
        // Predicated region
        $region41: #{tpu_custom_call.1} parent=39 // pred_check
          %p257 = pneg %p42
        $region42: #{tpu_custom_call.1} parent=39 // pred_check_branch
          %259 = sbr.rel (%p257) target = $region44
        $region43: #{tpu_custom_call.1} parent=39 // pred_region
          %s260 = sand.u32 %s32, 1
          %s261 = scalar_lea.sflag [#allocation4], %s260
          %s262 = sand.u32 %s32, 1
          %s263 = smul.addr %s262, 512
          %s264 = scalar_lea.vmem [#allocation3], %s263
          %s265 = smul.u32 16, %s22
          %s267 = ssub.s32 8192, 8192
          %268 = vsyncadd %s261, %s267
          %s269 = smul.addr %s265, 4
          %s270 = smul.addr %s269, 128
          %s271 = scalar_lea.hbm %s0, %s270
          %s272 = sshll.u32 %s264, 4
          %s273 = int_to_ptr.vmem [resolvable:$true] %s272
          %278 = dma.hbm_to_vmem [thread:$0]  %s271, 8192, %s273, %s261, 512, 512, 32
        $region44: #{tpu_custom_call.1} parent=39 // pred_fallthru
          _
      $region40: #{tpu_custom_call.1} parent=5 // pred_fallthru
        _
      %p279 = scmp.le.s32.totalorder 1, %s22
      %p280 = scmp.lt.s32.totalorder %s22, 3
      %p281 = pnand %p279, %p280
      %p282 = pneg %p281
      // Predicated region
      $region45: #{tpu_custom_call.1} parent=5 // pred_check
        _
      $region46: #{tpu_custom_call.1} parent=5 // pred_check_branch
        %284 = sbr.rel (%p281) target = $region48
      $region47: #{tpu_custom_call.1} parent=5 // pred_region
        %s285 = ssub.s32 %s22, 1
        %s286 = sand.u32 %s35, 1
        %s287 = scalar_lea.sflag [#allocation4], %s286
        %s288 = sand.u32 %s35, 1
        %s289 = smul.addr %s288, 512
        %s290 = scalar_lea.vmem [#allocation3], %s289
        // Predicated region
        $region49: #{tpu_custom_call.1} parent=47 // pred_check
          %p291 = pneg %p48
        $region50: #{tpu_custom_call.1} parent=47 // pred_check_branch
          %293 = sbr.rel (%p291) target = $region52
        $region51: #{tpu_custom_call.1} parent=47 // pred_region
          %294 = dma.done %s287, 8192
        $region52: #{tpu_custom_call.1} parent=47 // pred_fallthru
          _
        // Predicated region
        $region53: #{tpu_custom_call.1} parent=47 // pred_check
          %p295 = pneg %p69
        $region54: #{tpu_custom_call.1} parent=47 // pred_check_branch
          %297 = sbr.rel (%p295) target = $region56
        $region55: #{tpu_custom_call.1} parent=47 // pred_region
          %298 = dma.done [#allocation7], 16384
        $region56: #{tpu_custom_call.1} parent=47 // pred_fallthru
          _
        // Predicated region
        $region57: #{tpu_custom_call.1} parent=47 // pred_check
          %p299 = pneg %p111
        $region58: #{tpu_custom_call.1} parent=47 // pred_check_branch
          %301 = sbr.rel (%p299) target = $region60
        $region59: #{tpu_custom_call.1} parent=47 // pred_region
          %302 = dma.done [#allocation7], 4096
        $region60: #{tpu_custom_call.1} parent=47 // pred_fallthru
          _
        %s303 = sand.u32 %s35, 1
        %s304 = scalar_lea.sflag [#allocation4], %s303
        %s305 = sand.u32 %s35, 1
        %s306 = smul.addr %s305, 512
        %s307 = scalar_lea.vmem [#allocation3], %s306
        %p308 = pneg %p48
        %p309 = pneg %p45
        %p310 = pneg %p69
        %p311 = pneg %p66
        %p312 = pneg %p90
        %p313 = pneg %p87
        %p314 = pneg %p111
        %p315 = pneg %p108
        %p316 = pneg %p132
        %p317 = pneg %p129
        %p318 = pneg %p153
        %p319 = pneg %p150
        %p320 = pneg %p174
        %p321 = pneg %p171
        %p322 = pneg %p200
        %p323 = pneg %p197
        %s324 = sand.u32 %s187, 1
        %s325 = scalar_lea.sflag [#allocation5], %s324
        %s326 = sand.u32 %s187, 1
        %s327 = scalar_lea.vmem [#allocation9], %s326
        %s328 = smul.u32 16, %s27
        %v329 = vld [vmem:[%s290] sm:$0xff]
        %v330 = vld [vmem:[%s290 + $0x8] sm:$0xff]
        %v331 = vld [vmem:[%s290 + $0x10] sm:$0xff]
        %v332 = vld [vmem:[%s290 + $0x18] sm:$0xff]
        %v333 = vld [vmem:[%s290 + $0x20] sm:$0xff]
        %v334 = vld [vmem:[%s290 + $0x28] sm:$0xff]
        %v335 = vld [vmem:[%s290 + $0x30] sm:$0xff]
        %v336 = vld [vmem:[%s290 + $0x38] sm:$0xff]
        %v337 = vld [vmem:[%s290 + $0x40] sm:$0xff]
        %v338 = vld [vmem:[%s290 + $0x48] sm:$0xff]
        %v339 = vld [vmem:[%s290 + $0x50] sm:$0xff]
        %v340 = vld [vmem:[%s290 + $0x58] sm:$0xff]
        %v341 = vld [vmem:[%s290 + $0x60] sm:$0xff]
        %v342 = vld [vmem:[%s290 + $0x68] sm:$0xff]
        %v343 = vld [vmem:[%s290 + $0x70] sm:$0xff]
        %v344 = vld [vmem:[%s290 + $0x78] sm:$0xff]
        %v345 = vld [vmem:[%s290 + $0x80] sm:$0xff]
        %v346 = vld [vmem:[%s290 + $0x88] sm:$0xff]
        %v347 = vld [vmem:[%s290 + $0x90] sm:$0xff]
        %v348 = vld [vmem:[%s290 + $0x98] sm:$0xff]
        %v349 = vld [vmem:[%s290 + $0xa0] sm:$0xff]
        %v350 = vld [vmem:[%s290 + $0xa8] sm:$0xff]
        %v351 = vld [vmem:[%s290 + $0xb0] sm:$0xff]
        %v352 = vld [vmem:[%s290 + $0xb8] sm:$0xff]
        %v353 = vld [vmem:[%s290 + $0xc0] sm:$0xff]
        %v354 = vld [vmem:[%s290 + $0xc8] sm:$0xff]
        %v355 = vld [vmem:[%s290 + $0xd0] sm:$0xff]
        %v356 = vld [vmem:[%s290 + $0xd8] sm:$0xff]
        %v357 = vld [vmem:[%s290 + $0xe0] sm:$0xff]
        %v358 = vld [vmem:[%s290 + $0xe8] sm:$0xff]
        %v359 = vld [vmem:[%s290 + $0xf0] sm:$0xff]
        %v360 = vld [vmem:[%s290 + $0xf8] sm:$0xff]
        %v361 = vld [vmem:[%s290 + $0x100] sm:$0xff]
        %v362 = vld [vmem:[%s290 + $0x108] sm:$0xff]
        %v363 = vld [vmem:[%s290 + $0x110] sm:$0xff]
        %v364 = vld [vmem:[%s290 + $0x118] sm:$0xff]
        %v365 = vld [vmem:[%s290 + $0x120] sm:$0xff]
        %v366 = vld [vmem:[%s290 + $0x128] sm:$0xff]
        %v367 = vld [vmem:[%s290 + $0x130] sm:$0xff]
        %v368 = vld [vmem:[%s290 + $0x138] sm:$0xff]
        %v369 = vld [vmem:[%s290 + $0x140] sm:$0xff]
        %v370 = vld [vmem:[%s290 + $0x148] sm:$0xff]
        %v371 = vld [vmem:[%s290 + $0x150] sm:$0xff]
        %v372 = vld [vmem:[%s290 + $0x158] sm:$0xff]
        %v373 = vld [vmem:[%s290 + $0x160] sm:$0xff]
        %v374 = vld [vmem:[%s290 + $0x168] sm:$0xff]
        %v375 = vld [vmem:[%s290 + $0x170] sm:$0xff]
        %v376 = vld [vmem:[%s290 + $0x178] sm:$0xff]
        %v377 = vld [vmem:[%s290 + $0x180] sm:$0xff]
        %v378 = vld [vmem:[%s290 + $0x188] sm:$0xff]
        %v379 = vld [vmem:[%s290 + $0x190] sm:$0xff]
        %v380 = vld [vmem:[%s290 + $0x198] sm:$0xff]
        %v381 = vld [vmem:[%s290 + $0x1a0] sm:$0xff]
        %v382 = vld [vmem:[%s290 + $0x1a8] sm:$0xff]
        %v383 = vld [vmem:[%s290 + $0x1b0] sm:$0xff]
        %v384 = vld [vmem:[%s290 + $0x1b8] sm:$0xff]
        %v385 = vld [vmem:[%s290 + $0x1c0] sm:$0xff]
        %v386 = vld [vmem:[%s290 + $0x1c8] sm:$0xff]
        %v387 = vld [vmem:[%s290 + $0x1d0] sm:$0xff]
        %v388 = vld [vmem:[%s290 + $0x1d8] sm:$0xff]
        %v389 = vld [vmem:[%s290 + $0x1e0] sm:$0xff]
        %v390 = vld [vmem:[%s290 + $0x1e8] sm:$0xff]
        %v391 = vld [vmem:[%s290 + $0x1f0] sm:$0xff]
        %v392 = vld [vmem:[%s290 + $0x1f8] sm:$0xff]
        %v393 = vld [vmem:[#allocation6] sm:$0xff]
        %v394 = vld [vmem:[#allocation6 + $0x8] sm:$0xff]
        %v395 = vld [vmem:[#allocation6 + $0x10] sm:$0xff]
        %v396 = vld [vmem:[#allocation6 + $0x18] sm:$0xff]
        %v397 = vld [vmem:[#allocation6 + $0x20] sm:$0xff]
        %v398 = vld [vmem:[#allocation6 + $0x28] sm:$0xff]
        %v399 = vld [vmem:[#allocation6 + $0x30] sm:$0xff]
        %v400 = vld [vmem:[#allocation6 + $0x38] sm:$0xff]
        %v401 = vld [vmem:[#allocation6 + $0x40] sm:$0xff]
        %v402 = vld [vmem:[#allocation6 + $0x48] sm:$0xff]
        %v403 = vld [vmem:[#allocation6 + $0x50] sm:$0xff]
        %v404 = vld [vmem:[#allocation6 + $0x58] sm:$0xff]
        %v405 = vld [vmem:[#allocation6 + $0x60] sm:$0xff]
        %v406 = vld [vmem:[#allocation6 + $0x68] sm:$0xff]
        %v407 = vld [vmem:[#allocation6 + $0x70] sm:$0xff]
        %v408 = vld [vmem:[#allocation6 + $0x78] sm:$0xff]
        %v409 = vld [vmem:[#allocation6 + $0x80] sm:$0xff]
        %v410 = vld [vmem:[#allocation6 + $0x88] sm:$0xff]
        %v411 = vld [vmem:[#allocation6 + $0x90] sm:$0xff]
        %v412 = vld [vmem:[#allocation6 + $0x98] sm:$0xff]
        %v413 = vld [vmem:[#allocation6 + $0xa0] sm:$0xff]
        %v414 = vld [vmem:[#allocation6 + $0xa8] sm:$0xff]
        %v415 = vld [vmem:[#allocation6 + $0xb0] sm:$0xff]
        %v416 = vld [vmem:[#allocation6 + $0xb8] sm:$0xff]
        %v417 = vld [vmem:[#allocation6 + $0xc0] sm:$0xff]
        %v418 = vld [vmem:[#allocation6 + $0xc8] sm:$0xff]
        %v419 = vld [vmem:[#allocation6 + $0xd0] sm:$0xff]
        %v420 = vld [vmem:[#allocation6 + $0xd8] sm:$0xff]
        %v421 = vld [vmem:[#allocation6 + $0xe0] sm:$0xff]
        %v422 = vld [vmem:[#allocation6 + $0xe8] sm:$0xff]
        %v423 = vld [vmem:[#allocation6 + $0xf0] sm:$0xff]
        %v424 = vld [vmem:[#allocation6 + $0xf8] sm:$0xff]
        %v425 = vld [vmem:[#allocation6 + $0x100] sm:$0xff]
        %v426 = vld [vmem:[#allocation6 + $0x108] sm:$0xff]
        %v427 = vld [vmem:[#allocation6 + $0x110] sm:$0xff]
        %v428 = vld [vmem:[#allocation6 + $0x118] sm:$0xff]
        %v429 = vld [vmem:[#allocation6 + $0x120] sm:$0xff]
        %v430 = vld [vmem:[#allocation6 + $0x128] sm:$0xff]
        %v431 = vld [vmem:[#allocation6 + $0x130] sm:$0xff]
        %v432 = vld [vmem:[#allocation6 + $0x138] sm:$0xff]
        %v433 = vld [vmem:[#allocation6 + $0x140] sm:$0xff]
        %v434 = vld [vmem:[#allocation6 + $0x148] sm:$0xff]
        %v435 = vld [vmem:[#allocation6 + $0x150] sm:$0xff]
        %v436 = vld [vmem:[#allocation6 + $0x158] sm:$0xff]
        %v437 = vld [vmem:[#allocation6 + $0x160] sm:$0xff]
        %v438 = vld [vmem:[#allocation6 + $0x168] sm:$0xff]
        %v439 = vld [vmem:[#allocation6 + $0x170] sm:$0xff]
        %v440 = vld [vmem:[#allocation6 + $0x178] sm:$0xff]
        %v441 = vld [vmem:[#allocation6 + $0x180] sm:$0xff]
        %v442 = vld [vmem:[#allocation6 + $0x188] sm:$0xff]
        %v443 = vld [vmem:[#allocation6 + $0x190] sm:$0xff]
        %v444 = vld [vmem:[#allocation6 + $0x198] sm:$0xff]
        %v445 = vld [vmem:[#allocation6 + $0x1a0] sm:$0xff]
        %v446 = vld [vmem:[#allocation6 + $0x1a8] sm:$0xff]
        %v447 = vld [vmem:[#allocation6 + $0x1b0] sm:$0xff]
        %v448 = vld [vmem:[#allocation6 + $0x1b8] sm:$0xff]
        %v449 = vld [vmem:[#allocation6 + $0x1c0] sm:$0xff]
        %v450 = vld [vmem:[#allocation6 + $0x1c8] sm:$0xff]
        %v451 = vld [vmem:[#allocation6 + $0x1d0] sm:$0xff]
        %v452 = vld [vmem:[#allocation6 + $0x1d8] sm:$0xff]
        %v453 = vld [vmem:[#allocation6 + $0x1e0] sm:$0xff]
        %v454 = vld [vmem:[#allocation6 + $0x1e8] sm:$0xff]
        %v455 = vld [vmem:[#allocation6 + $0x1f0] sm:$0xff]
        %v456 = vld [vmem:[#allocation6 + $0x1f8] sm:$0xff]
        %v457 = vld [vmem:[#allocation6 + $0x200] sm:$0xff]
        %v458 = vld [vmem:[#allocation6 + $0x208] sm:$0xff]
        %v459 = vld [vmem:[#allocation6 + $0x210] sm:$0xff]
        %v460 = vld [vmem:[#allocation6 + $0x218] sm:$0xff]
        %v461 = vld [vmem:[#allocation6 + $0x220] sm:$0xff]
        %v462 = vld [vmem:[#allocation6 + $0x228] sm:$0xff]
        %v463 = vld [vmem:[#allocation6 + $0x230] sm:$0xff]
        %v464 = vld [vmem:[#allocation6 + $0x238] sm:$0xff]
        %v465 = vld [vmem:[#allocation6 + $0x240] sm:$0xff]
        %v466 = vld [vmem:[#allocation6 + $0x248] sm:$0xff]
        %v467 = vld [vmem:[#allocation6 + $0x250] sm:$0xff]
        %v468 = vld [vmem:[#allocation6 + $0x258] sm:$0xff]
        %v469 = vld [vmem:[#allocation6 + $0x260] sm:$0xff]
        %v470 = vld [vmem:[#allocation6 + $0x268] sm:$0xff]
        %v471 = vld [vmem:[#allocation6 + $0x270] sm:$0xff]
        %v472 = vld [vmem:[#allocation6 + $0x278] sm:$0xff]
        %v473 = vld [vmem:[#allocation6 + $0x280] sm:$0xff]
        %v474 = vld [vmem:[#allocation6 + $0x288] sm:$0xff]
        %v475 = vld [vmem:[#allocation6 + $0x290] sm:$0xff]
        %v476 = vld [vmem:[#allocation6 + $0x298] sm:$0xff]
        %v477 = vld [vmem:[#allocation6 + $0x2a0] sm:$0xff]
        %v478 = vld [vmem:[#allocation6 + $0x2a8] sm:$0xff]
        %v479 = vld [vmem:[#allocation6 + $0x2b0] sm:$0xff]
        %v480 = vld [vmem:[#allocation6 + $0x2b8] sm:$0xff]
        %v481 = vld [vmem:[#allocation6 + $0x2c0] sm:$0xff]
        %v482 = vld [vmem:[#allocation6 + $0x2c8] sm:$0xff]
        %v483 = vld [vmem:[#allocation6 + $0x2d0] sm:$0xff]
        %v484 = vld [vmem:[#allocation6 + $0x2d8] sm:$0xff]
        %v485 = vld [vmem:[#allocation6 + $0x2e0] sm:$0xff]
        %v486 = vld [vmem:[#allocation6 + $0x2e8] sm:$0xff]
        %v487 = vld [vmem:[#allocation6 + $0x2f0] sm:$0xff]
        %v488 = vld [vmem:[#allocation6 + $0x2f8] sm:$0xff]
        %v489 = vld [vmem:[#allocation6 + $0x300] sm:$0xff]
        %v490 = vld [vmem:[#allocation6 + $0x308] sm:$0xff]
        %v491 = vld [vmem:[#allocation6 + $0x310] sm:$0xff]
        %v492 = vld [vmem:[#allocation6 + $0x318] sm:$0xff]
        %v493 = vld [vmem:[#allocation6 + $0x320] sm:$0xff]
        %v494 = vld [vmem:[#allocation6 + $0x328] sm:$0xff]
        %v495 = vld [vmem:[#allocation6 + $0x330] sm:$0xff]
        %v496 = vld [vmem:[#allocation6 + $0x338] sm:$0xff]
        %v497 = vld [vmem:[#allocation6 + $0x340] sm:$0xff]
        %v498 = vld [vmem:[#allocation6 + $0x348] sm:$0xff]
        %v499 = vld [vmem:[#allocation6 + $0x350] sm:$0xff]
        %v500 = vld [vmem:[#allocation6 + $0x358] sm:$0xff]
        %v501 = vld [vmem:[#allocation6 + $0x360] sm:$0xff]
        %v502 = vld [vmem:[#allocation6 + $0x368] sm:$0xff]
        %v503 = vld [vmem:[#allocation6 + $0x370] sm:$0xff]
        %v504 = vld [vmem:[#allocation6 + $0x378] sm:$0xff]
        %v505 = vld [vmem:[#allocation6 + $0x380] sm:$0xff]
        %v506 = vld [vmem:[#allocation6 + $0x388] sm:$0xff]
        %v507 = vld [vmem:[#allocation6 + $0x390] sm:$0xff]
        %v508 = vld [vmem:[#allocation6 + $0x398] sm:$0xff]
        %v509 = vld [vmem:[#allocation6 + $0x3a0] sm:$0xff]
        %v510 = vld [vmem:[#allocation6 + $0x3a8] sm:$0xff]
        %v511 = vld [vmem:[#allocation6 + $0x3b0] sm:$0xff]
        %v512 = vld [vmem:[#allocation6 + $0x3b8] sm:$0xff]
        %v513 = vld [vmem:[#allocation6 + $0x3c0] sm:$0xff]
        %v514 = vld [vmem:[#allocation6 + $0x3c8] sm:$0xff]
        %v515 = vld [vmem:[#allocation6 + $0x3d0] sm:$0xff]
        %v516 = vld [vmem:[#allocation6 + $0x3d8] sm:$0xff]
        %v517 = vld [vmem:[#allocation6 + $0x3e0] sm:$0xff]
        %v518 = vld [vmem:[#allocation6 + $0x3e8] sm:$0xff]
        %v519 = vld [vmem:[#allocation6 + $0x3f0] sm:$0xff]
        %v520 = vld [vmem:[#allocation6 + $0x3f8] sm:$0xff]
        %v521 = vld [vmem:[%s2] sm:$0x3]
        %v523 = vlaneseq
        %v524 = vshrl.u32 %v523, 7
        %v525 = vsub.s32 0, %v524
        %v526 = vrot.slane %v521, %v525
        %v527 = vlaneseq
        %v528 = vshrl.u32 %v527, 7
        %v529 = vsub.s32 1, %v528
        %v530 = vrot.slane %v521, %v529
        %533 = vmatprep.subr.mxu0 %v394
        %534 = vmatpush1.msra.mxu0 %v393
        %535 = vmatprep.subr.mxu0 %v396
        %536 = vmatpush1.msra.mxu0 %v395
        %537 = vmatprep.subr.mxu0 %v398
        %538 = vmatpush1.msra.mxu0 %v397
        %539 = vmatprep.subr.mxu0 %v400
        %540 = vmatpush1.msra.mxu0 %v399
        %541 = vmatprep.subr.mxu0 %v402
        %542 = vmatpush1.msra.mxu0 %v401
        %543 = vmatprep.subr.mxu0 %v404
        %544 = vmatpush1.msra.mxu0 %v403
        %545 = vmatprep.subr.mxu0 %v406
        %546 = vmatpush1.msra.mxu0 %v405
        %547 = vmatprep.subr.mxu0 %v408
        %548 = vmatpush1.msra.mxu0 %v407
        %549 = vmatprep.subr.mxu0 %v410
        %550 = vmatpush1.msra.mxu0 %v409
        %551 = vmatprep.subr.mxu0 %v412
        %552 = vmatpush1.msra.mxu0 %v411
        %553 = vmatprep.subr.mxu0 %v414
        %554 = vmatpush1.msra.mxu0 %v413
        %555 = vmatprep.subr.mxu0 %v416
        %556 = vmatpush1.msra.mxu0 %v415
        %557 = vmatprep.subr.mxu0 %v418
        %558 = vmatpush1.msra.mxu0 %v417
        %559 = vmatprep.subr.mxu0 %v420
        %560 = vmatpush1.msra.mxu0 %v419
        %561 = vmatprep.subr.mxu0 %v422
        %562 = vmatpush1.msra.mxu0 %v421
        %563 = vmatprep.subr.mxu0 %v424
        %564 = vmatpush1.msra.mxu0 %v423
        %565 = vmatprep.subr.mxu0 %v426
        %566 = vmatpush1.msra.mxu0 %v425
        %567 = vmatprep.subr.mxu0 %v428
        %568 = vmatpush1.msra.mxu0 %v427
        %569 = vmatprep.subr.mxu0 %v430
        %570 = vmatpush1.msra.mxu0 %v429
        %571 = vmatprep.subr.mxu0 %v432
        %572 = vmatpush1.msra.mxu0 %v431
        %573 = vmatprep.subr.mxu0 %v434
        %574 = vmatpush1.msra.mxu0 %v433
        %575 = vmatprep.subr.mxu0 %v436
        %576 = vmatpush1.msra.mxu0 %v435
        %577 = vmatprep.subr.mxu0 %v438
        %578 = vmatpush1.msra.mxu0 %v437
        %579 = vmatprep.subr.mxu0 %v440
        %580 = vmatpush1.msra.mxu0 %v439
        %581 = vmatprep.subr.mxu0 %v442
        %582 = vmatpush1.msra.mxu0 %v441
        %583 = vmatprep.subr.mxu0 %v444
        %584 = vmatpush1.msra.mxu0 %v443
        %585 = vmatprep.subr.mxu0 %v446
        %586 = vmatpush1.msra.mxu0 %v445
        %587 = vmatprep.subr.mxu0 %v448
        %588 = vmatpush1.msra.mxu0 %v447
        %589 = vmatprep.subr.mxu0 %v450
        %590 = vmatpush1.msra.mxu0 %v449
        %591 = vmatprep.subr.mxu0 %v452
        %592 = vmatpush1.msra.mxu0 %v451
        %593 = vmatprep.subr.mxu0 %v454
        %594 = vmatpush1.msra.mxu0 %v453
        %595 = vmatprep.subr.mxu0 %v456
        %596 = vmatpush1.msra.mxu0 %v455
        %597 = vmatprep.mubr.f32.mxu0 %v330
        %598 = vmatmul.mubr.f32.gmra.mrb[0].mxu0 %v329
        %v599 = vpop.f32.mrb[0].mxu0
        %v600 = vadd.f32 %v526, %v599
        %v601 = vpop.f32.mrb[0].mxu0
        %v602 = vadd.f32 %v530, %v601
        %603 = vmatprep.mubr.f32.mxu0 %v334
        %604 = vmatmul.mubr.f32.gmra.mrb[0].mxu0 %v333
        %v605 = vpop.f32.mrb[0].mxu0
        %v606 = vadd.f32 %v526, %v605
        %v607 = vpop.f32.mrb[0].mxu0
        %v608 = vadd.f32 %v530, %v607
        %609 = vmatprep.mubr.f32.mxu0 %v338
        %610 = vmatmul.mubr.f32.gmra.mrb[0].mxu0 %v337
        %v611 = vpop.f32.mrb[0].mxu0
        %v612 = vadd.f32 %v526, %v611
        %v613 = vpop.f32.mrb[0].mxu0
        %v614 = vadd.f32 %v530, %v613
        %615 = vmatprep.mubr.f32.mxu0 %v342
        %616 = vmatmul.mubr.f32.gmra.mrb[0].mxu0 %v341
        %v617 = vpop.f32.mrb[0].mxu0
        %v618 = vadd.f32 %v526, %v617
        %v619 = vpop.f32.mrb[0].mxu0
        %v620 = vadd.f32 %v530, %v619
        %621 = vmatprep.mubr.f32.mxu0 %v346
        %622 = vmatmul.mubr.f32.gmra.mrb[0].mxu0 %v345
        %v623 = vpop.f32.mrb[0].mxu0
        %v624 = vadd.f32 %v526, %v623
        %v625 = vpop.f32.mrb[0].mxu0
        %v626 = vadd.f32 %v530, %v625
        %627 = vmatprep.mubr.f32.mxu0 %v350
        %628 = vmatmul.mubr.f32.gmra.mrb[0].mxu0 %v349
        %v629 = vpop.f32.mrb[0].mxu0
        %v630 = vadd.f32 %v526, %v629
        %v631 = vpop.f32.mrb[0].mxu0
        %v632 = vadd.f32 %v530, %v631
        %633 = vmatprep.mubr.f32.mxu0 %v354
        %634 = vmatmul.mubr.f32.gmra.mrb[0].mxu0 %v353
        %v635 = vpop.f32.mrb[0].mxu0
        %v636 = vadd.f32 %v526, %v635
        %v637 = vpop.f32.mrb[0].mxu0
        %v638 = vadd.f32 %v530, %v637
        %639 = vmatprep.mubr.f32.mxu0 %v358
        %640 = vmatmul.mubr.f32.gmra.mrb[0].mxu0 %v357
        %v641 = vpop.f32.mrb[0].mxu0
        %v642 = vadd.f32 %v526, %v641
        %v643 = vpop.f32.mrb[0].mxu0
        %v644 = vadd.f32 %v530, %v643
        %645 = vmatprep.mubr.f32.mxu0 %v362
        %646 = vmatmul.mubr.f32.gmra.mrb[0].mxu0 %v361
        %v647 = vpop.f32.mrb[0].mxu0
        %v648 = vadd.f32 %v526, %v647
        %v649 = vpop.f32.mrb[0].mxu0
        %v650 = vadd.f32 %v530, %v649
        %651 = vmatprep.mubr.f32.mxu0 %v366
        %652 = vmatmul.mubr.f32.gmra.mrb[0].mxu0 %v365
        %v653 = vpop.f32.mrb[0].mxu0
        %v654 = vadd.f32 %v526, %v653
        %v655 = vpop.f32.mrb[0].mxu0
        %v656 = vadd.f32 %v530, %v655
        %657 = vmatprep.mubr.f32.mxu0 %v370
        %658 = vmatmul.mubr.f32.gmra.mrb[0].mxu0 %v369
        %v659 = vpop.f32.mrb[0].mxu0
        %v660 = vadd.f32 %v526, %v659
        %v661 = vpop.f32.mrb[0].mxu0
        %v662 = vadd.f32 %v530, %v661
        %663 = vmatprep.mubr.f32.mxu0 %v374
        %664 = vmatmul.mubr.f32.gmra.mrb[0].mxu0 %v373
        %v665 = vpop.f32.mrb[0].mxu0
        %v666 = vadd.f32 %v526, %v665
        %v667 = vpop.f32.mrb[0].mxu0
        %v668 = vadd.f32 %v530, %v667
        %669 = vmatprep.mubr.f32.mxu0 %v378
        %670 = vmatmul.mubr.f32.gmra.mrb[0].mxu0 %v377
        %v671 = vpop.f32.mrb[0].mxu0
        %v672 = vadd.f32 %v526, %v671
        %v673 = vpop.f32.mrb[0].mxu0
        %v674 = vadd.f32 %v530, %v673
        %675 = vmatprep.mubr.f32.mxu0 %v382
        %676 = vmatmul.mubr.f32.gmra.mrb[0].mxu0 %v381
        %v677 = vpop.f32.mrb[0].mxu0
        %v678 = vadd.f32 %v526, %v677
        %v679 = vpop.f32.mrb[0].mxu0
        %v680 = vadd.f32 %v530, %v679
        %681 = vmatprep.mubr.f32.mxu0 %v386
        %682 = vmatmul.mubr.f32.gmra.mrb[0].mxu0 %v385
        %v683 = vpop.f32.mrb[0].mxu0
        %v684 = vadd.f32 %v526, %v683
        %v685 = vpop.f32.mrb[0].mxu0
        %v686 = vadd.f32 %v530, %v685
        %687 = vmatprep.mubr.f32.mxu0 %v390
        %688 = vmatmul.mubr.f32.gmra.mrb[0].mxu0 %v389
        %v689 = vpop.f32.mrb[0].mxu0
        %v690 = vadd.f32 %v526, %v689
        %v691 = vpop.f32.mrb[0].mxu0
        %v692 = vadd.f32 %v530, %v691
        %693 = vdwg.mxu0
        %694 = vmatprep.subr.mxu0 %v458
        %695 = vmatpush1.msra.mxu0 %v457
        %696 = vmatprep.subr.mxu0 %v460
        %697 = vmatpush1.msra.mxu0 %v459
        %698 = vmatprep.subr.mxu0 %v462
        %699 = vmatpush1.msra.mxu0 %v461
        %700 = vmatprep.subr.mxu0 %v464
        %701 = vmatpush1.msra.mxu0 %v463
        %702 = vmatprep.subr.mxu0 %v466
        %703 = vmatpush1.msra.mxu0 %v465
        %704 = vmatprep.subr.mxu0 %v468
        %705 = vmatpush1.msra.mxu0 %v467
        %706 = vmatprep.subr.mxu0 %v470
        %707 = vmatpush1.msra.mxu0 %v469
        %708 = vmatprep.subr.mxu0 %v472
        %709 = vmatpush1.msra.mxu0 %v471
        %710 = vmatprep.subr.mxu0 %v474
        %711 = vmatpush1.msra.mxu0 %v473
        %712 = vmatprep.subr.mxu0 %v476
        %713 = vmatpush1.msra.mxu0 %v475
        %714 = vmatprep.subr.mxu0 %v478
        %715 = vmatpush1.msra.mxu0 %v477
        %716 = vmatprep.subr.mxu0 %v480
        %717 = vmatpush1.msra.mxu0 %v479
        %718 = vmatprep.subr.mxu0 %v482
        %719 = vmatpush1.msra.mxu0 %v481
        %720 = vmatprep.subr.mxu0 %v484
        %721 = vmatpush1.msra.mxu0 %v483
        %722 = vmatprep.subr.mxu0 %v486
        %723 = vmatpush1.msra.mxu0 %v485
        %724 = vmatprep.subr.mxu0 %v488
        %725 = vmatpush1.msra.mxu0 %v487
        %726 = vmatprep.subr.mxu0 %v490
        %727 = vmatpush1.msra.mxu0 %v489
        %728 = vmatprep.subr.mxu0 %v492
        %729 = vmatpush1.msra.mxu0 %v491
        %730 = vmatprep.subr.mxu0 %v494
        %731 = vmatpush1.msra.mxu0 %v493
        %732 = vmatprep.subr.mxu0 %v496
        %733 = vmatpush1.msra.mxu0 %v495
        %734 = vmatprep.subr.mxu0 %v498
        %735 = vmatpush1.msra.mxu0 %v497
        %736 = vmatprep.subr.mxu0 %v500
        %737 = vmatpush1.msra.mxu0 %v499
        %738 = vmatprep.subr.mxu0 %v502
        %739 = vmatpush1.msra.mxu0 %v501
        %740 = vmatprep.subr.mxu0 %v504
        %741 = vmatpush1.msra.mxu0 %v503
        %742 = vmatprep.subr.mxu0 %v506
        %743 = vmatpush1.msra.mxu0 %v505
        %744 = vmatprep.subr.mxu0 %v508
        %745 = vmatpush1.msra.mxu0 %v507
        %746 = vmatprep.subr.mxu0 %v510
        %747 = vmatpush1.msra.mxu0 %v509
        %748 = vmatprep.subr.mxu0 %v512
        %749 = vmatpush1.msra.mxu0 %v511
        %750 = vmatprep.subr.mxu0 %v514
        %751 = vmatpush1.msra.mxu0 %v513
        %752 = vmatprep.subr.mxu0 %v516
        %753 = vmatpush1.msra.mxu0 %v515
        %754 = vmatprep.subr.mxu0 %v518
        %755 = vmatpush1.msra.mxu0 %v517
        %756 = vmatprep.subr.mxu0 %v520
        %757 = vmatpush1.msra.mxu0 %v519
        %758 = vmatprep.mubr.f32.mxu0 %v332
        %759 = vmatmul.mubr.f32.gmra.mrb[0].mxu0 %v331
        %v760 = vpop.f32.mrb[0].mxu0
        %v761 = vadd.f32 %v600, %v760
        %v762 = vpop.f32.mrb[0].mxu0
        %v763 = vadd.f32 %v602, %v762
        %764 = vmatprep.mubr.f32.mxu0 %v336
        %765 = vmatmul.mubr.f32.gmra.mrb[0].mxu0 %v335
        %v766 = vpop.f32.mrb[0].mxu0
        %v767 = vadd.f32 %v606, %v766
        %v768 = vpop.f32.mrb[0].mxu0
        %v769 = vadd.f32 %v608, %v768
        %770 = vmatprep.mubr.f32.mxu0 %v340
        %771 = vmatmul.mubr.f32.gmra.mrb[0].mxu0 %v339
        %v772 = vpop.f32.mrb[0].mxu0
        %v773 = vadd.f32 %v612, %v772
        %v774 = vpop.f32.mrb[0].mxu0
        %v775 = vadd.f32 %v614, %v774
        %776 = vmatprep.mubr.f32.mxu0 %v344
        %777 = vmatmul.mubr.f32.gmra.mrb[0].mxu0 %v343
        %v778 = vpop.f32.mrb[0].mxu0
        %v779 = vadd.f32 %v618, %v778
        %v780 = vpop.f32.mrb[0].mxu0
        %v781 = vadd.f32 %v620, %v780
        %782 = vmatprep.mubr.f32.mxu0 %v348
        %783 = vmatmul.mubr.f32.gmra.mrb[0].mxu0 %v347
        %v784 = vpop.f32.mrb[0].mxu0
        %v785 = vadd.f32 %v624, %v784
        %v786 = vpop.f32.mrb[0].mxu0
        %v787 = vadd.f32 %v626, %v786
        %788 = vmatprep.mubr.f32.mxu0 %v352
        %789 = vmatmul.mubr.f32.gmra.mrb[0].mxu0 %v351
        %v790 = vpop.f32.mrb[0].mxu0
        %v791 = vadd.f32 %v630, %v790
        %v792 = vpop.f32.mrb[0].mxu0
        %v793 = vadd.f32 %v632, %v792
        %794 = vmatprep.mubr.f32.mxu0 %v356
        %795 = vmatmul.mubr.f32.gmra.mrb[0].mxu0 %v355
        %v796 = vpop.f32.mrb[0].mxu0
        %v797 = vadd.f32 %v636, %v796
        %v798 = vpop.f32.mrb[0].mxu0
        %v799 = vadd.f32 %v638, %v798
        %800 = vmatprep.mubr.f32.mxu0 %v360
        %801 = vmatmul.mubr.f32.gmra.mrb[0].mxu0 %v359
        %v802 = vpop.f32.mrb[0].mxu0
        %v803 = vadd.f32 %v642, %v802
        %v804 = vpop.f32.mrb[0].mxu0
        %v805 = vadd.f32 %v644, %v804
        %806 = vmatprep.mubr.f32.mxu0 %v364
        %807 = vmatmul.mubr.f32.gmra.mrb[0].mxu0 %v363
        %v808 = vpop.f32.mrb[0].mxu0
        %v809 = vadd.f32 %v648, %v808
        %v810 = vpop.f32.mrb[0].mxu0
        %v811 = vadd.f32 %v650, %v810
        %812 = vmatprep.mubr.f32.mxu0 %v368
        %813 = vmatmul.mubr.f32.gmra.mrb[0].mxu0 %v367
        %v814 = vpop.f32.mrb[0].mxu0
        %v815 = vadd.f32 %v654, %v814
        %v816 = vpop.f32.mrb[0].mxu0
        %v817 = vadd.f32 %v656, %v816
        %818 = vmatprep.mubr.f32.mxu0 %v372
        %819 = vmatmul.mubr.f32.gmra.mrb[0].mxu0 %v371
        %v820 = vpop.f32.mrb[0].mxu0
        %v821 = vadd.f32 %v660, %v820
        %v822 = vpop.f32.mrb[0].mxu0
        %v823 = vadd.f32 %v662, %v822
        %824 = vmatprep.mubr.f32.mxu0 %v376
        %825 = vmatmul.mubr.f32.gmra.mrb[0].mxu0 %v375
        %v826 = vpop.f32.mrb[0].mxu0
        %v827 = vadd.f32 %v666, %v826
        %v828 = vpop.f32.mrb[0].mxu0
        %v829 = vadd.f32 %v668, %v828
        %830 = vmatprep.mubr.f32.mxu0 %v380
        %831 = vmatmul.mubr.f32.gmra.mrb[0].mxu0 %v379
        %v832 = vpop.f32.mrb[0].mxu0
        %v833 = vadd.f32 %v672, %v832
        %v834 = vpop.f32.mrb[0].mxu0
        %v835 = vadd.f32 %v674, %v834
        %836 = vmatprep.mubr.f32.mxu0 %v384
        %837 = vmatmul.mubr.f32.gmra.mrb[0].mxu0 %v383
        %v838 = vpop.f32.mrb[0].mxu0
        %v839 = vadd.f32 %v678, %v838
        %v840 = vpop.f32.mrb[0].mxu0
        %v841 = vadd.f32 %v680, %v840
        %842 = vmatprep.mubr.f32.mxu0 %v388
        %843 = vmatmul.mubr.f32.gmra.mrb[0].mxu0 %v387
        %v844 = vpop.f32.mrb[0].mxu0
        %v845 = vadd.f32 %v684, %v844
        %v846 = vpop.f32.mrb[0].mxu0
        %v847 = vadd.f32 %v686, %v846
        %848 = vmatprep.mubr.f32.mxu0 %v392
        %849 = vmatmul.mubr.f32.gmra.mrb[0].mxu0 %v391
        %v850 = vpop.f32.mrb[0].mxu0
        %v851 = vadd.f32 %v690, %v850
        %v852 = vpop.f32.mrb[0].mxu0
        %v853 = vadd.f32 %v692, %v852
        %854 = vdwg.mxu0
        %v855 = vmul.f32 %v761, 0.2
        %v856 = vmul.f32 %v763, 0.2
        %v857 = vmul.f32 %v767, 0.2
        %v858 = vmul.f32 %v769, 0.2
        %v859 = vmul.f32 %v773, 0.2
        %v860 = vmul.f32 %v775, 0.2
        %v861 = vmul.f32 %v779, 0.2
        %v862 = vmul.f32 %v781, 0.2
        %v863 = vmul.f32 %v785, 0.2
        %v864 = vmul.f32 %v787, 0.2
        %v865 = vmul.f32 %v791, 0.2
        %v866 = vmul.f32 %v793, 0.2
        %v867 = vmul.f32 %v797, 0.2
        %v868 = vmul.f32 %v799, 0.2
        %v869 = vmul.f32 %v803, 0.2
        %v870 = vmul.f32 %v805, 0.2
        %v871 = vmul.f32 %v809, 0.2
        %v872 = vmul.f32 %v811, 0.2
        %v873 = vmul.f32 %v815, 0.2
        %v874 = vmul.f32 %v817, 0.2
        %v875 = vmul.f32 %v821, 0.2
        %v876 = vmul.f32 %v823, 0.2
        %v877 = vmul.f32 %v827, 0.2
        %v878 = vmul.f32 %v829, 0.2
        %v879 = vmul.f32 %v833, 0.2
        %v880 = vmul.f32 %v835, 0.2
        %v881 = vmul.f32 %v839, 0.2
        %v882 = vmul.f32 %v841, 0.2
        %v883 = vmul.f32 %v845, 0.2
        %v884 = vmul.f32 %v847, 0.2
        %v885 = vmul.f32 %v851, 0.2
        %v886 = vmul.f32 %v853, 0.2
        %v887 = vmax.f32 %v761, %v855
        %v888 = vmax.f32 %v763, %v856
        %v889 = vmax.f32 %v767, %v857
        %v890 = vmax.f32 %v769, %v858
        %v891 = vmax.f32 %v773, %v859
        %v892 = vmax.f32 %v775, %v860
        %v893 = vmax.f32 %v779, %v861
        %v894 = vmax.f32 %v781, %v862
        %v895 = vmax.f32 %v785, %v863
        %v896 = vmax.f32 %v787, %v864
        %v897 = vmax.f32 %v791, %v865
        %v898 = vmax.f32 %v793, %v866
        %v899 = vmax.f32 %v797, %v867
        %v900 = vmax.f32 %v799, %v868
        %v901 = vmax.f32 %v803, %v869
        %v902 = vmax.f32 %v805, %v870
        %v903 = vmax.f32 %v809, %v871
        %v904 = vmax.f32 %v811, %v872
        %v905 = vmax.f32 %v815, %v873
        %v906 = vmax.f32 %v817, %v874
        %v907 = vmax.f32 %v821, %v875
        %v908 = vmax.f32 %v823, %v876
        %v909 = vmax.f32 %v827, %v877
        %v910 = vmax.f32 %v829, %v878
        %v911 = vmax.f32 %v833, %v879
        %v912 = vmax.f32 %v835, %v880
        %v913 = vmax.f32 %v839, %v881
        %v914 = vmax.f32 %v841, %v882
        %v915 = vmax.f32 %v845, %v883
        %v916 = vmax.f32 %v847, %v884
        %v917 = vmax.f32 %v851, %v885
        %v918 = vmax.f32 %v853, %v886
        %v919 = vld [vmem:[#allocation8] sm:$0xff]
        %v920 = vld [vmem:[#allocation8 + $0x8] sm:$0xff]
        %v921 = vld [vmem:[#allocation8 + $0x10] sm:$0xff]
        %v922 = vld [vmem:[#allocation8 + $0x18] sm:$0xff]
        %v923 = vld [vmem:[#allocation8 + $0x20] sm:$0xff]
        %v924 = vld [vmem:[#allocation8 + $0x28] sm:$0xff]
        %v925 = vld [vmem:[#allocation8 + $0x30] sm:$0xff]
        %v926 = vld [vmem:[#allocation8 + $0x38] sm:$0xff]
        %v927 = vld [vmem:[#allocation8 + $0x40] sm:$0xff]
        %v928 = vld [vmem:[#allocation8 + $0x48] sm:$0xff]
        %v929 = vld [vmem:[#allocation8 + $0x50] sm:$0xff]
        %v930 = vld [vmem:[#allocation8 + $0x58] sm:$0xff]
        %v931 = vld [vmem:[#allocation8 + $0x60] sm:$0xff]
        %v932 = vld [vmem:[#allocation8 + $0x68] sm:$0xff]
        %v933 = vld [vmem:[#allocation8 + $0x70] sm:$0xff]
        %v934 = vld [vmem:[#allocation8 + $0x78] sm:$0xff]
        %v935 = vld [vmem:[#allocation8 + $0x80] sm:$0xff]
        %v936 = vld [vmem:[#allocation8 + $0x88] sm:$0xff]
        %v937 = vld [vmem:[#allocation8 + $0x90] sm:$0xff]
        %v938 = vld [vmem:[#allocation8 + $0x98] sm:$0xff]
        %v939 = vld [vmem:[#allocation8 + $0xa0] sm:$0xff]
        %v940 = vld [vmem:[#allocation8 + $0xa8] sm:$0xff]
        %v941 = vld [vmem:[#allocation8 + $0xb0] sm:$0xff]
        %v942 = vld [vmem:[#allocation8 + $0xb8] sm:$0xff]
        %v943 = vld [vmem:[#allocation8 + $0xc0] sm:$0xff]
        %v944 = vld [vmem:[#allocation8 + $0xc8] sm:$0xff]
        %v945 = vld [vmem:[#allocation8 + $0xd0] sm:$0xff]
        %v946 = vld [vmem:[#allocation8 + $0xd8] sm:$0xff]
        %v947 = vld [vmem:[#allocation8 + $0xe0] sm:$0xff]
        %v948 = vld [vmem:[#allocation8 + $0xe8] sm:$0xff]
        %v949 = vld [vmem:[#allocation8 + $0xf0] sm:$0xff]
        %v950 = vld [vmem:[#allocation8 + $0xf8] sm:$0xff]
        %v951 = vld [vmem:[%s4] sm:$0x1]
        %v953 = vlaneseq
        %v954 = vshrl.u32 %v953, 7
        %v955 = vsub.s32 0, %v954
        %v956 = vrot.slane %v951, %v955
        %958 = vmatprep.subr.mxu0 0.0
        %959 = vmatpush1.msra.mxu0 %v919
        %960 = vmatprep.subr.mxu0 0.0
        %961 = vmatpush1.msra.mxu0 %v920
        %962 = vmatprep.subr.mxu0 0.0
        %963 = vmatpush1.msra.mxu0 %v921
        %964 = vmatprep.subr.mxu0 0.0
        %965 = vmatpush1.msra.mxu0 %v922
        %966 = vmatprep.subr.mxu0 0.0
        %967 = vmatpush1.msra.mxu0 %v923
        %968 = vmatprep.subr.mxu0 0.0
        %969 = vmatpush1.msra.mxu0 %v924
        %970 = vmatprep.subr.mxu0 0.0
        %971 = vmatpush1.msra.mxu0 %v925
        %972 = vmatprep.subr.mxu0 0.0
        %973 = vmatpush1.msra.mxu0 %v926
        %974 = vmatprep.subr.mxu0 0.0
        %975 = vmatpush1.msra.mxu0 %v927
        %976 = vmatprep.subr.mxu0 0.0
        %977 = vmatpush1.msra.mxu0 %v928
        %978 = vmatprep.subr.mxu0 0.0
        %979 = vmatpush1.msra.mxu0 %v929
        %980 = vmatprep.subr.mxu0 0.0
        %981 = vmatpush1.msra.mxu0 %v930
        %982 = vmatprep.subr.mxu0 0.0
        %983 = vmatpush1.msra.mxu0 %v931
        %984 = vmatprep.subr.mxu0 0.0
        %985 = vmatpush1.msra.mxu0 %v932
        %986 = vmatprep.subr.mxu0 0.0
        %987 = vmatpush1.msra.mxu0 %v933
        %988 = vmatprep.subr.mxu0 0.0
        %989 = vmatpush1.msra.mxu0 %v934
        %990 = vmatprep.subr.mxu0 0.0
        %991 = vmatpush1.msra.mxu0 %v935
        %992 = vmatprep.subr.mxu0 0.0
        %993 = vmatpush1.msra.mxu0 %v936
        %994 = vmatprep.subr.mxu0 0.0
        %995 = vmatpush1.msra.mxu0 %v937
        %996 = vmatprep.subr.mxu0 0.0
        %997 = vmatpush1.msra.mxu0 %v938
        %998 = vmatprep.subr.mxu0 0.0
        %999 = vmatpush1.msra.mxu0 %v939
        %1000 = vmatprep.subr.mxu0 0.0
        %1001 = vmatpush1.msra.mxu0 %v940
        %1002 = vmatprep.subr.mxu0 0.0
        %1003 = vmatpush1.msra.mxu0 %v941
        %1004 = vmatprep.subr.mxu0 0.0
        %1005 = vmatpush1.msra.mxu0 %v942
        %1006 = vmatprep.subr.mxu0 0.0
        %1007 = vmatpush1.msra.mxu0 %v943
        %1008 = vmatprep.subr.mxu0 0.0
        %1009 = vmatpush1.msra.mxu0 %v944
        %1010 = vmatprep.subr.mxu0 0.0
        %1011 = vmatpush1.msra.mxu0 %v945
        %1012 = vmatprep.subr.mxu0 0.0
        %1013 = vmatpush1.msra.mxu0 %v946
        %1014 = vmatprep.subr.mxu0 0.0
        %1015 = vmatpush1.msra.mxu0 %v947
        %1016 = vmatprep.subr.mxu0 0.0
        %1017 = vmatpush1.msra.mxu0 %v948
        %1018 = vmatprep.subr.mxu0 0.0
        %1019 = vmatpush1.msra.mxu0 %v949
        %1020 = vmatprep.subr.mxu0 0.0
        %1021 = vmatpush1.msra.mxu0 %v950
        %1022 = vmatprep.mubr.f32.mxu0 %v888
        %1023 = vmatmul.mubr.f32.gmra.mrb[0].mxu0 %v887
        %v1024 = vpop.f32.mrb[0].mxu0
        %v1025 = vadd.f32 %v956, %v1024
        %v1026 = vpop.f32.mrb[0].mxu0
        %1027 = vmatprep.mubr.f32.mxu0 %v890
        %1028 = vmatmul.mubr.f32.gmra.mrb[0].mxu0 %v889
        %v1029 = vpop.f32.mrb[0].mxu0
        %v1030 = vadd.f32 %v956, %v1029
        %v1031 = vpop.f32.mrb[0].mxu0
        %1032 = vmatprep.mubr.f32.mxu0 %v892
        %1033 = vmatmul.mubr.f32.gmra.mrb[0].mxu0 %v891
        %v1034 = vpop.f32.mrb[0].mxu0
        %v1035 = vadd.f32 %v956, %v1034
        %v1036 = vpop.f32.mrb[0].mxu0
        %1037 = vmatprep.mubr.f32.mxu0 %v894
        %1038 = vmatmul.mubr.f32.gmra.mrb[0].mxu0 %v893
        %v1039 = vpop.f32.mrb[0].mxu0
        %v1040 = vadd.f32 %v956, %v1039
        %v1041 = vpop.f32.mrb[0].mxu0
        %1042 = vmatprep.mubr.f32.mxu0 %v896
        %1043 = vmatmul.mubr.f32.gmra.mrb[0].mxu0 %v895
        %v1044 = vpop.f32.mrb[0].mxu0
        %v1045 = vadd.f32 %v956, %v1044
        %v1046 = vpop.f32.mrb[0].mxu0
        %1047 = vmatprep.mubr.f32.mxu0 %v898
        %1048 = vmatmul.mubr.f32.gmra.mrb[0].mxu0 %v897
        %v1049 = vpop.f32.mrb[0].mxu0
        %v1050 = vadd.f32 %v956, %v1049
        %v1051 = vpop.f32.mrb[0].mxu0
        %1052 = vmatprep.mubr.f32.mxu0 %v900
        %1053 = vmatmul.mubr.f32.gmra.mrb[0].mxu0 %v899
        %v1054 = vpop.f32.mrb[0].mxu0
        %v1055 = vadd.f32 %v956, %v1054
        %v1056 = vpop.f32.mrb[0].mxu0
        %1057 = vmatprep.mubr.f32.mxu0 %v902
        %1058 = vmatmul.mubr.f32.gmra.mrb[0].mxu0 %v901
        %v1059 = vpop.f32.mrb[0].mxu0
        %v1060 = vadd.f32 %v956, %v1059
        %v1061 = vpop.f32.mrb[0].mxu0
        %1062 = vmatprep.mubr.f32.mxu0 %v904
        %1063 = vmatmul.mubr.f32.gmra.mrb[0].mxu0 %v903
        %v1064 = vpop.f32.mrb[0].mxu0
        %v1065 = vadd.f32 %v956, %v1064
        %v1066 = vpop.f32.mrb[0].mxu0
        %1067 = vmatprep.mubr.f32.mxu0 %v906
        %1068 = vmatmul.mubr.f32.gmra.mrb[0].mxu0 %v905
        %v1069 = vpop.f32.mrb[0].mxu0
        %v1070 = vadd.f32 %v956, %v1069
        %v1071 = vpop.f32.mrb[0].mxu0
        %1072 = vmatprep.mubr.f32.mxu0 %v908
        %1073 = vmatmul.mubr.f32.gmra.mrb[0].mxu0 %v907
        %v1074 = vpop.f32.mrb[0].mxu0
        %v1075 = vadd.f32 %v956, %v1074
        %v1076 = vpop.f32.mrb[0].mxu0
        %1077 = vmatprep.mubr.f32.mxu0 %v910
        %1078 = vmatmul.mubr.f32.gmra.mrb[0].mxu0 %v909
        %v1079 = vpop.f32.mrb[0].mxu0
        %v1080 = vadd.f32 %v956, %v1079
        %v1081 = vpop.f32.mrb[0].mxu0
        %1082 = vmatprep.mubr.f32.mxu0 %v912
        %1083 = vmatmul.mubr.f32.gmra.mrb[0].mxu0 %v911
        %v1084 = vpop.f32.mrb[0].mxu0
        %v1085 = vadd.f32 %v956, %v1084
        %v1086 = vpop.f32.mrb[0].mxu0
        %1087 = vmatprep.mubr.f32.mxu0 %v914
        %1088 = vmatmul.mubr.f32.gmra.mrb[0].mxu0 %v913
        %v1089 = vpop.f32.mrb[0].mxu0
        %v1090 = vadd.f32 %v956, %v1089
        %v1091 = vpop.f32.mrb[0].mxu0
        %1092 = vmatprep.mubr.f32.mxu0 %v916
        %1093 = vmatmul.mubr.f32.gmra.mrb[0].mxu0 %v915
        %v1094 = vpop.f32.mrb[0].mxu0
        %v1095 = vadd.f32 %v956, %v1094
        %v1096 = vpop.f32.mrb[0].mxu0
        %1097 = vmatprep.mubr.f32.mxu0 %v918
        %1098 = vmatmul.mubr.f32.gmra.mrb[0].mxu0 %v917
        %v1099 = vpop.f32.mrb[0].mxu0
        %v1100 = vadd.f32 %v956, %v1099
        %v1101 = vpop.f32.mrb[0].mxu0
        %1102 = vdwg.mxu0
        %v1103 = vmul.f32 %v1025, 0.2
        %v1104 = vmul.f32 %v1030, 0.2
        %v1105 = vmul.f32 %v1035, 0.2
        %v1106 = vmul.f32 %v1040, 0.2
        %v1107 = vmul.f32 %v1045, 0.2
        %v1108 = vmul.f32 %v1050, 0.2
        %v1109 = vmul.f32 %v1055, 0.2
        %v1110 = vmul.f32 %v1060, 0.2
        %v1111 = vmul.f32 %v1065, 0.2
        %v1112 = vmul.f32 %v1070, 0.2
        %v1113 = vmul.f32 %v1075, 0.2
        %v1114 = vmul.f32 %v1080, 0.2
        %v1115 = vmul.f32 %v1085, 0.2
        %v1116 = vmul.f32 %v1090, 0.2
        %v1117 = vmul.f32 %v1095, 0.2
        %v1118 = vmul.f32 %v1100, 0.2
        %v1119 = vmax.f32 %v1025, %v1103
        %v1120 = vmax.f32 %v1030, %v1104
        %v1121 = vmax.f32 %v1035, %v1105
        %v1122 = vmax.f32 %v1040, %v1106
        %v1123 = vmax.f32 %v1045, %v1107
        %v1124 = vmax.f32 %v1050, %v1108
        %v1125 = vmax.f32 %v1055, %v1109
        %v1126 = vmax.f32 %v1060, %v1110
        %v1127 = vmax.f32 %v1065, %v1111
        %v1128 = vmax.f32 %v1070, %v1112
        %v1129 = vmax.f32 %v1075, %v1113
        %v1130 = vmax.f32 %v1080, %v1114
        %v1131 = vmax.f32 %v1085, %v1115
        %v1132 = vmax.f32 %v1090, %v1116
        %v1133 = vmax.f32 %v1095, %v1117
        %v1134 = vmax.f32 %v1100, %v1118
        %v1135 = vld [vmem:[%s5] sm:$0x1]
        %v1136 = vld [vmem:[#allocation2] sm:$0x1]
        %1138 = vset.pattern.permute.xlu0 0
        %1139 = vperm.xlu0 %1138, %v1136
        %v1140 = vpop.permute.xlu0 %1139
        %v1142 = vlaneseq
        %v1143 = vshrl.u32 %v1142, 7
        %v1144 = vsub.s32 0, %v1143
        %v1145 = vrot.slane %v1140, %v1144
        %1146 = vmatprep.subr.mxu0 0.0
        %1147 = vmatpush1.xpose.msra.mxu0 %v1119
        %1148 = vmatprep.subr.mxu0 0.0
        %1149 = vmatpush1.xpose.msra.mxu0 %v1120
        %1150 = vmatprep.subr.mxu0 0.0
        %1151 = vmatpush1.xpose.msra.mxu0 %v1121
        %1152 = vmatprep.subr.mxu0 0.0
        %1153 = vmatpush1.xpose.msra.mxu0 %v1122
        %1154 = vmatprep.subr.mxu0 0.0
        %1155 = vmatpush1.xpose.msra.mxu0 %v1123
        %1156 = vmatprep.subr.mxu0 0.0
        %1157 = vmatpush1.xpose.msra.mxu0 %v1124
        %1158 = vmatprep.subr.mxu0 0.0
        %1159 = vmatpush1.xpose.msra.mxu0 %v1125
        %1160 = vmatprep.subr.mxu0 0.0
        %1161 = vmatpush1.xpose.msra.mxu0 %v1126
        %1162 = vmatprep.subr.mxu0 0.0
        %1163 = vmatpush1.xpose.msra.mxu0 %v1127
        %1164 = vmatprep.subr.mxu0 0.0
        %1165 = vmatpush1.xpose.msra.mxu0 %v1128
        %1166 = vmatprep.subr.mxu0 0.0
        %1167 = vmatpush1.xpose.msra.mxu0 %v1129
        %1168 = vmatprep.subr.mxu0 0.0
        %1169 = vmatpush1.xpose.msra.mxu0 %v1130
        %1170 = vmatprep.subr.mxu0 0.0
        %1171 = vmatpush1.xpose.msra.mxu0 %v1131
        %1172 = vmatprep.subr.mxu0 0.0
        %1173 = vmatpush1.xpose.msra.mxu0 %v1132
        %1174 = vmatprep.subr.mxu0 0.0
        %1175 = vmatpush1.xpose.msra.mxu0 %v1133
        %1176 = vmatprep.subr.mxu0 0.0
        %1177 = vmatpush1.xpose.msra.mxu0 %v1134
        %1178 = vmatprep.subr.mxu0 0.0
        %1179 = vmatpush1.xpose.msra.mxu0 0.0
        %1180 = vmatprep.subr.mxu0 0.0
        %1181 = vmatpush1.xpose.msra.mxu0 0.0
        %1182 = vmatprep.subr.mxu0 0.0
        %1183 = vmatpush1.xpose.msra.mxu0 0.0
        %1184 = vmatprep.subr.mxu0 0.0
        %1185 = vmatpush1.xpose.msra.mxu0 0.0
        %1186 = vmatprep.subr.mxu0 0.0
        %1187 = vmatpush1.xpose.msra.mxu0 0.0
        %1188 = vmatprep.subr.mxu0 0.0
        %1189 = vmatpush1.xpose.msra.mxu0 0.0
        %1190 = vmatprep.subr.mxu0 0.0
        %1191 = vmatpush1.xpose.msra.mxu0 0.0
        %1192 = vmatprep.subr.mxu0 0.0
        %1193 = vmatpush1.xpose.msra.mxu0 0.0
        %1194 = vmatprep.subr.mxu0 0.0
        %1195 = vmatpush1.xpose.msra.mxu0 0.0
        %1196 = vmatprep.subr.mxu0 0.0
        %1197 = vmatpush1.xpose.msra.mxu0 0.0
        %1198 = vmatprep.subr.mxu0 0.0
        %1199 = vmatpush1.xpose.msra.mxu0 0.0
        %1200 = vmatprep.subr.mxu0 0.0
        %1201 = vmatpush1.xpose.msra.mxu0 0.0
        %1202 = vmatprep.subr.mxu0 0.0
        %1203 = vmatpush1.xpose.msra.mxu0 0.0
        %1204 = vmatprep.subr.mxu0 0.0
        %1205 = vmatpush1.xpose.msra.mxu0 0.0
        %1206 = vmatprep.subr.mxu0 0.0
        %1207 = vmatpush1.xpose.msra.mxu0 0.0
        %1208 = vmatprep.subr.mxu0 0.0
        %1209 = vmatpush1.xpose.msra.mxu0 0.0
        %1210 = vmatprep.mubr.f32.mxu0 0.0
        %1211 = vmatmul.mubr.f32.gmra.mrb[0].mxu0 %v1135
        %v1212 = vpop.f32.mrb[0].mxu0
        %v1213 = vadd.f32 %v1145, %v1212
        %v1214 = vpop.f32.mrb[0].mxu0
        %1215 = vdwg.mxu0
        %v1216 = vxor.u32 %v1213, 2147483648
        %v1217 = vmul.f32 %v1216, 1.442695
        %v1218 = vpow.pop %v1217
        %v1219 = vadd.f32 %v1218, 1.0
        %v1220 = vrcp.pop %v1219
        %v1221 = vmul.f32 1.0, %v1220
        %1222 = vst [vmem:[%s327] sm:$0x1] %v1221
        %s1223 = sand.u32 %s187, 1
        %s1224 = scalar_lea.sflag [#allocation5], %s1223
        %s1225 = sand.u32 %s187, 1
        %s1226 = scalar_lea.vmem [#allocation9], %s1225
        // Predicated region
        $region61: #{tpu_custom_call.1} parent=47 // pred_check
          %p1227 = pneg %p197
        $region62: #{tpu_custom_call.1} parent=47 // pred_check_branch
          %1229 = sbr.rel (%p1227) target = $region64
        $region63: #{tpu_custom_call.1} parent=47 // pred_region
          %s1231 = ssub.s32 16, 16
          %1232 = vsyncadd %s1224, %s1231
          %s1233 = smul.addr %s27, 16
          %s1234 = scalar_lea.hbm %s7, %s1233
          %s1236 = sshll.u32 %s1226, 4
          %s1237 = int_to_ptr.vmem [resolvable:$true] %s1236
          %1239 = dma.vmem_to_hbm [thread:$0]  %s1237, 16, %s1234, %s1224
        $region64: #{tpu_custom_call.1} parent=47 // pred_fallthru
          _
      $region48: #{tpu_custom_call.1} parent=5 // pred_fallthru
        _
      %p1240 = scmp.le.s32.totalorder 2, %s22
      // Predicated region
      $region65: #{tpu_custom_call.1} parent=5 // pred_check
        %p1241 = pneg %p1240
      $region66: #{tpu_custom_call.1} parent=5 // pred_check_branch
        %1243 = sbr.rel (%p1241) target = $region68
      $region67: #{tpu_custom_call.1} parent=5 // pred_region
        %s1244 = ssub.s32 %s22, 2
        // Predicated region
        $region69: #{tpu_custom_call.1} parent=67 // pred_check
          %p1245 = pneg %p203
        $region70: #{tpu_custom_call.1} parent=67 // pred_check_branch
          %1247 = sbr.rel (%p1245) target = $region72
        $region71: #{tpu_custom_call.1} parent=67 // pred_region
          %s1248 = sand.u32 %s188, 1
          %s1249 = scalar_lea.sflag [#allocation5], %s1248
          %s1250 = sand.u32 %s188, 1
          %s1251 = scalar_lea.vmem [#allocation9], %s1250
          %1252 = dma.done %s1249, 16
        $region72: #{tpu_custom_call.1} parent=67 // pred_fallthru
          _
      $region68: #{tpu_custom_call.1} parent=5 // pred_fallthru
        _
    $region6: #{tpu_custom_call.1} parent=1 // loop_footer
      %s26 = sadd.s32 1, %s22
    $region7: #{tpu_custom_call.1} parent=1 // loop_footer_branch
      %21 = sbr.rel target = $region3
    $region8: #{tpu_custom_call.1} parent=1 // loop_exit
      _
    %1253 = vsyncpa [#allocation4], 1
    %s1254 = scalar_lea.sflag [#allocation4], 1
    %1255 = vsyncpa %s1254, 1
    %1256 = vsyncpa [#allocation7], 1
    %1257 = vsyncpa [#allocation5], 1
    %s1258 = scalar_lea.sflag [#allocation5], 1
    %1259 = vsyncpa %s1258, 1

</llo_original>
